<compile_context>
chip_gen: v7x
topology: tpu7x:2x2x1
jax: 0.10.0
libtpu: 0.0.40
codegen_flags: <defaults>
</compile_context>

<pallas_src>
import math

import jax
import jax.numpy as jnp
from jax.experimental import pallas as pl
from jax.experimental.pallas import tpu as pltpu


def _round_up(x, m):
    return ((x + m - 1) // m) * m


def _tpu_generation():
    try:
        kind = jax.devices()[0].device_kind.lower()
    except Exception:
        return None
    for gen in ("v7", "v6", "v5"):
        if gen in kind:
            return gen
    return None


def _pick_tile(extent, align, max_tile):
    """Largest tile (multiple of `align`, <= max_tile) minimising padding."""
    padded = _round_up(extent, align)
    if padded <= max_tile:
        return padded
    best, best_key = align, None
    cand = align
    while cand <= max_tile:
        pad = _round_up(padded, cand) - padded
        key = (pad, -cand)          # least padding first, then biggest tile
        if best_key is None or key < best_key:
            best_key, best = key, cand
        cand += align
    return best


def _affinity_kernel(a_ref, x_ref, yt_ref, o_ref, xa_ref):
    # a_ref:  (D, D)   pre-symmetrized A (single-buffered; constant block idx)
    # x_ref:  (tn, D)  X tile for (b, i)
    # yt_ref: (D, tm)  Y^T tile for (b, j)  (canonical MXU layout, lane-dense)
    # o_ref:  (tn, tm) output tile
    # xa_ref: (tn, D)  f32 scratch, persistent across the innermost (j) axis
    @pl.when(pl.program_id(2) == 0)
    def _():
        # X_tile @ A_sym computed once per (b, i); reused for every M tile.
        xa_ref[...] = jnp.dot(x_ref[...], a_ref[...],
                              preferred_element_type=jnp.float32)

    xa = xa_ref[...].astype(yt_ref.dtype)   # no-op in f32; 1 rounding in bf16
    # Canonical (tn, D) @ (D, tm) -> (tn, tm): no transpose anywhere in-kernel.
    o_ref[...] = jnp.dot(xa, yt_ref[...],
                         preferred_element_type=jnp.float32).astype(o_ref.dtype)


def affinity_layer(X, Y, A, *, use_bf16=False):
    """Compute M = X @ ((A + A^T)/2) @ Y^T with a tiled Pallas TPU kernel.

    X: (B, N, D), Y: (B, M, D), A: (D, D). Returns (B, N, M) float32.
    """
    B, N, D = X.shape
    Bm, M, Dy = Y.shape
    assert B == Bm and D == Dy and A.shape == (D, D)

    # Symmetrize once per call, not per grid step.
    A_sym = (A + A.T) * 0.5

    compute_dtype = jnp.bfloat16 if use_bf16 else jnp.float32
    elt = jnp.dtype(compute_dtype).itemsize
    Xc = X.astype(compute_dtype)
    Yc = Y.astype(compute_dtype)
    Ac = A_sym.astype(compute_dtype)

    gen = _tpu_generation()
    # tn targets: large enough that the Y-streaming inner loop (~2*tn/elt F/B)
    # clears each generation's HBM roofline crossover.
    if gen == "v6":
        tn_target = 1024 if use_bf16 else 512
        vmem_cap = 104 << 20          # 128 MiB physical VMEM
    elif gen == "v5":
        tn_target = 512 if use_bf16 else 256
        vmem_cap = 100 << 20          # 128 MiB physical VMEM
    elif gen == "v7":
        tn_target = 512
        vmem_cap = 56 << 20           # 64 MiB physical; leave Mosaic headroom
    else:
        tn_target = 512
        vmem_cap = 56 << 20

    n_align = 16 if use_bf16 else 8   # bf16 packs 16 sublanes per vreg
    tn = _pick_tile(N, n_align, max(tn_target, n_align))
    tm = _pick_tile(M, 128, 512)      # output lane dim: multiple of 128

    # Megacore fallback: ensure the parallel (b, i) axes expose >= 2 tiles.
    if B * (_round_up(N, tn) // tn) < 2:
        tn_half = max(n_align, _round_up(-(-N // 2), n_align))
        if _round_up(N, tn_half) // tn_half >= 2:
            tn = tn_half

    y_bufs = 3 if use_bf16 else 2

    def footprint(tn_, tm_):
        return (D * D * elt               # A_sym, single-buffered
                + 2 * tn_ * D * elt       # X tile, double-buffered
                + y_bufs * D * tm_ * elt  # Y^T tile
                + 2 * tn_ * tm_ * 4       # f32 output tile, double-buffered
                + tn_ * D * 4)            # f32 xa scratch

    # Shrink tiles if the working set would not fit the per-generation budget.
    while footprint(tn, tm) > vmem_cap and tn > n_align:
        tn = max(n_align, _round_up(tn // 2, n_align))
    while footprint(tn, tm) > vmem_cap and tm > 128:
        tm = max(128, _round_up(tm // 2, 128))

    N_pad = _round_up(N, tn)
    M_pad = _round_up(M, tm)
    if N_pad != N:
        Xc = jnp.pad(Xc, ((0, 0), (0, N_pad - N), (0, 0)))
    if M_pad != M:
        Yc = jnp.pad(Yc, ((0, 0), (0, M_pad - M), (0, 0)))
    # One-time HBM transpose so the kernel consumes canonical (D, tm) blocks;
    # amortized over all N-tile re-reads of Y.
    Yt = jnp.swapaxes(Yc, 1, 2)       # (B, D, M_pad)

    grid = (B, N_pad // tn, M_pad // tm)

    fp = footprint(tn, tm)
    vmem_limit = min(max(int(fp * 1.25) + (2 << 20), 32 << 20), vmem_cap)
    vmem_limit = int(max(vmem_limit, fp + (1 << 20)))  # never below footprint

    # TODO(synk): tile the contraction dim D (reduction grid axis + f32 VMEM
    # accumulator with pl.when init/finalize) once D*D*elt stops fitting VMEM
    # comfortably (D >= ~1536 f32 / ~2048 bf16, mainly relevant on v7x).

    out = pl.pallas_call(
        _affinity_kernel,
        out_shape=jax.ShapeDtypeStruct((B, N_pad, M_pad), jnp.float32),
        grid_spec=pltpu.PrefetchScalarGridSpec(
            num_scalar_prefetch=0,
            grid=grid,
            in_specs=[
                # A_sym is grid-invariant: single buffer, nothing to prefetch.
                pl.BlockSpec((D, D), lambda b, i, j: (0, 0),
                             pipeline_mode=pl.Buffered(1)),
                pl.BlockSpec((None, tn, D), lambda b, i, j: (b, i, 0)),   # X
                pl.BlockSpec((None, D, tm), lambda b, i, j: (b, 0, j),    # Y^T
                             pipeline_mode=pl.Buffered(y_bufs)),
            ],
            out_specs=pl.BlockSpec((None, tn, tm), lambda b, i, j: (b, i, j)),
            scratch_shapes=[pltpu.VMEM((tn, D), jnp.float32)],
        ),
        compiler_params=pltpu.CompilerParams(
            # j carries the xa scratch across iterations -> "arbitrary";
            # b and the N-tile axis are parallel (megacore sharding).
            dimension_semantics=("parallel", "parallel", "arbitrary"),
            vmem_limit_bytes=vmem_limit,
        ),
    )(Ac, Xc, Yt)

    return out[:, :N, :M]


def make_affinity_params(dim, key):
    """Deterministic re-implementation of AffinityLayer.reset_parameters()."""
    std = 1.0 / math.sqrt(dim)
    A = jax.random.uniform(key, (dim, dim), jnp.float32, minval=-std, maxval=std)
    A = A + jnp.eye(dim, dtype=jnp.float32)
    return A


if __name__ == "__main__":
    key = jax.random.PRNGKey(0)
    k_a, k_x, k_y, k_x2, k_y2 = jax.random.split(key, 5)

    # Small shapes consistent with the module.
    B, N, M, DIM = 2, 8, 8, 32
    A = make_affinity_params(DIM, k_a)
    X = jax.random.normal(k_x, (B, N, DIM), jnp.float32)
    Y = jax.random.normal(k_y, (B, M, DIM), jnp.float32)

    A_sym = (A + A.T) * 0.5
    out = jax.block_until_ready(affinity_layer(X, Y, A))
    ref = jnp.einsum("bnd,de,bme->bnm", X, A_sym, Y,
                     precision=jax.lax.Precision.HIGHEST)
    assert out.shape == (B, N, M)
    assert jnp.allclose(out, ref, atol=1e-4, rtol=1e-4), "f32 small mismatch"

    # Padded / multi-tile path: N, M not multiples of the tiles, B=1
    # (exercises pad+slice, xa reuse across j, and the megacore tn-halving).
    B2, N2, M2, D2 = 1, 200, 600, 64
    A2 = make_affinity_params(D2, k_a)
    X2 = jax.random.normal(k_x2, (B2, N2, D2), jnp.float32)
    Y2 = jax.random.normal(k_y2, (B2, M2, D2), jnp.float32)
    A2_sym = (A2 + A2.T) * 0.5
    out2 = jax.block_until_ready(affinity_layer(X2, Y2, A2))
    ref2 = jnp.einsum("bnd,de,bme->bnm", X2, A2_sym, Y2,
                      precision=jax.lax.Precision.HIGHEST)
    assert out2.shape == (B2, N2, M2)
    assert jnp.allclose(out2, ref2, atol=1e-3, rtol=1e-3), "f32 padded mismatch"

    # bf16 MXU path (bf16 inputs, f32 accumulation, f32 xa scratch).
    out_bf16 = jax.block_until_ready(affinity_layer(X, Y, A, use_bf16=True))
    assert float(jnp.max(jnp.abs(out_bf16 - ref))) < 0.5, "bf16 mismatch"

    print("KERNEL_OK")
</pallas_src>

<mosaic_0001>
module attributes {stable_mosaic.version = 11 : i64} {
  func.func @_affinity_kernel(%arg0: i32, %arg1: i32, %arg2: i32, %arg3: memref<32x32xf32, #tpu.memory_space<vmem>>, %arg4: memref<1x8x32xf32, #tpu.memory_space<vmem>>, %arg5: memref<1x32x128xf32, #tpu.memory_space<vmem>>, %arg6: memref<1x8x128xf32, #tpu.memory_space<vmem>>, %arg7: memref<8x32xf32, #tpu.memory_space<vmem>>) attributes {dimension_semantics = [#tpu.dimension_semantics<parallel>, #tpu.dimension_semantics<parallel>, #tpu.dimension_semantics<arbitrary>], iteration_bounds = array<i64: 2, 1, 1>, scalar_prefetch = 0 : i64, scratch_operands = 1 : i64, tpu.core_type = #tpu.core_type<tc>, window_params = [{pipeline_mode = #tpu.pipeline_mode<synchronous>, transform_indices = @transform_0, window_bounds = array<i64: 32, 32>}, {transform_indices = @transform_1, window_bounds = array<i64: 1, 8, 32>}, {pipeline_mode = #tpu.pipeline_mode<double_buffered>, transform_indices = @transform_2, window_bounds = array<i64: 1, 32, 128>}, {transform_indices = @transform_3, window_bounds = array<i64: 1, 8, 128>}]} {
    %c0_i32 = arith.constant 0 : i32
    %0 = arith.cmpi eq, %arg2, %c0_i32 : i32
    %1 = arith.extui %0 : i1 to i32
    %c0_i32_0 = arith.constant 0 : i32
    %2 = arith.cmpi ne, %1, %c0_i32_0 : i32
    scf.if %2 {
      %c0_8 = arith.constant 0 : index
      %c0_9 = arith.constant 0 : index
      %c0_10 = arith.constant 0 : index
      %10 = vector.load %arg4[%c0_8, %c0_9, %c0_10] : memref<1x8x32xf32, #tpu.memory_space<vmem>>, vector<1x8x32xf32>
      %11 = vector.shape_cast %10 : vector<1x8x32xf32> to vector<8x32xf32>
      %c0_11 = arith.constant 0 : index
      %c0_12 = arith.constant 0 : index
      %12 = vector.load %arg3[%c0_11, %c0_12] : memref<32x32xf32, #tpu.memory_space<vmem>>, vector<32x32xf32>
      %cst_13 = arith.constant dense<0.000000e+00> : vector<8x32xf32>
      %13 = tpu.matmul %11, %12, %cst_13 {dimension_numbers = #tpu.dot_dimension_numbers<[1], [0], [0], [1], [0, 0, 1, 1], [], []>} : vector<8x32xf32>, vector<32x32xf32>, vector<8x32xf32> -> vector<8x32xf32>
      %c0_14 = arith.constant 0 : index
      %c0_15 = arith.constant 0 : index
      %14 = vector.load %arg7[%c0_14, %c0_15] : memref<8x32xf32, #tpu.memory_space<vmem>>, vector<8x32xf32>
      tpu.vector_store %arg7[%c0_14, %c0_15], %13 {strides = array<i32>} : memref<8x32xf32, #tpu.memory_space<vmem>>, vector<8x32xf32>,
    } else {
    }
    %c0 = arith.constant 0 : index
    %c0_1 = arith.constant 0 : index
    %3 = vector.load %arg7[%c0, %c0_1] : memref<8x32xf32, #tpu.memory_space<vmem>>, vector<8x32xf32>
    %c0_2 = arith.constant 0 : index
    %c0_3 = arith.constant 0 : index
    %c0_4 = arith.constant 0 : index
    %4 = vector.load %arg5[%c0_2, %c0_3, %c0_4] : memref<1x32x128xf32, #tpu.memory_space<vmem>>, vector<1x32x128xf32>
    %5 = vector.shape_cast %4 : vector<1x32x128xf32> to vector<32x128xf32>
    %cst = arith.constant dense<0.000000e+00> : vector<8x128xf32>
    %6 = tpu.matmul %3, %5, %cst {dimension_numbers = #tpu.dot_dimension_numbers<[1], [0], [0], [1], [0, 0, 1, 1], [], []>} : vector<8x32xf32>, vector<32x128xf32>, vector<8x128xf32> -> vector<8x128xf32>
    %c0_5 = arith.constant 0 : index
    %c0_6 = arith.constant 0 : index
    %c0_7 = arith.constant 0 : index
    %7 = vector.load %arg6[%c0_5, %c0_6, %c0_7] : memref<1x8x128xf32, #tpu.memory_space<vmem>>, vector<1x8x128xf32>
    %8 = vector.shape_cast %7 : vector<1x8x128xf32> to vector<8x128xf32>
    %9 = vector.shape_cast %6 : vector<8x128xf32> to vector<1x8x128xf32>
    tpu.vector_store %arg6[%c0_5, %c0_6, %c0_7], %9 {strides = array<i32>} : memref<1x8x128xf32, #tpu.memory_space<vmem>>, vector<1x8x128xf32>,
    return
  }
  func.func @transform_0(%arg0: i32, %arg1: i32, %arg2: i32) -> (i32, i32) {
    %c0_i32 = arith.constant 0 : i32
    %c0_i32_0 = arith.constant 0 : i32
    %c0_i32_1 = arith.constant 0 : i32
    return %c0_i32, %c0_i32_0 : i32, i32
  }
  func.func @transform_1(%arg0: i32, %arg1: i32, %arg2: i32) -> (i32, i32, i32) {
    %c0_i32 = arith.constant 0 : i32
    %c0_i32_0 = arith.constant 0 : i32
    return %arg0, %arg1, %c0_i32 : i32, i32, i32
  }
  func.func @transform_2(%arg0: i32, %arg1: i32, %arg2: i32) -> (i32, i32, i32) {
    %c0_i32 = arith.constant 0 : i32
    %c0_i32_0 = arith.constant 0 : i32
    return %arg0, %c0_i32, %arg2 : i32, i32, i32
  }
  func.func @transform_3(%arg0: i32, %arg1: i32, %arg2: i32) -> (i32, i32, i32) {
    %c0_i32 = arith.constant 0 : i32
    return %arg0, %arg1, %arg2 : i32, i32, i32
  }
}

</mosaic_0001>

<llo_original>
// kernel: tpu_custom_call.1
$region0: #{tpu_custom_call.1}
  #allocation0 [shape = 'u32[]', space=smem, size = 0x4, offset = 0x4, fixed_abs, tag = 'smem constant byte address 0x4 - core index']
  #allocation1 [shape = 'u32[144,128]{1,0:T(1,128)}', space=vmem, size = 0x12000, scoped, tag = 'internal scratch']
  #allocation2 [shape = 'f32[8,32]{1,0:T(8,128)}', space=vmem, size = 0x1000, scoped, tag = 'scratch operand']
  %s0 = inlined_call_operand.hbm [shape: f32[32,32], index: 0, kind: input, shape index: {}]
  %s1 = inlined_call_operand.hbm [shape: f32[2,8,32], index: 1, kind: input, shape index: {}]
  %s2 = inlined_call_operand.hbm [shape: f32[2,32,128], index: 2, kind: input, shape index: {}]
  %s3 = inlined_call_operand.hbm [shape: f32[2,8,128], index: 3, kind: output, shape index: {}]
  %s4 = sld [smem:[#allocation0]]
  $region61: #{tpu_custom_call.1} parent=0
    _
  %s6 = ssub.s32 1, %s4
  %s7 = scalar_select 0, %s6, %s4
  $region1: #{tpu_custom_call.1} parent=0
    #allocation3 [shape = 'u8[16384]{0}', space=vmem, size = 0x4000, scoped, tag = 'input window, operand 0, single buffered']
    #allocation4 [shape = 's32[2]{0}', space=sflag, size = 0x8, scoped, tag = 'scoped memory for tpu_custom_call.1']
    #allocation5 [shape = 's32[2]{0}', space=sflag, size = 0x8, scoped, tag = 'scoped memory for tpu_custom_call.1']
    #allocation6 [shape = 'u8[8192]{0}', space=vmem, size = 0x2000, scoped, tag = 'input window, operand 1']
    #allocation7 [shape = 's32[2]{0}', space=sflag, size = 0x8, scoped, tag = 'scoped memory for tpu_custom_call.1']
    #allocation8 [shape = 'u8[32768]{0}', space=vmem, size = 0x8000, scoped, tag = 'input window, operand 2']
    #allocation9 [shape = 'u8[8192]{0}', space=vmem, size = 0x2000, scoped, tag = 'output window, operand 0']
    %8 = vsyncpa [#allocation4], 0
    %9 = vsyncpa [#allocation7], 0
    %s10 = scalar_lea.sflag [#allocation7], 1
    %11 = vsyncpa %s10, 0
    %12 = vsyncpa [#allocation5], 0
    %s13 = scalar_lea.sflag [#allocation5], 1
    %14 = vsyncpa %s13, 0
    loop: start=0, step=1, limit=4
    $region2: #{tpu_custom_call.1} parent=1 // loop_pre_header
      _
    $region3: #{tpu_custom_call.1} parent=1 // loop_header
      %s16 = sphi 0, %s20
      %p17 = scmp.ge.s32.totalorder %s16, 4
      %s23 = sphi 0, %s42
      %s24 = sphi 0, %s38
      %s25 = sphi 0, %s34
      %s26 = sphi 0, %s23
      %s27 = sphi 0, %s24
      %s28 = sphi 0, %s25
      %s29 = sphi 0, %s26
      %s30 = sphi 0, %s27
      %s31 = sphi 0, %s28
      %s43 = sphi 0, %s43
      %s45 = sphi 0, %s43
      %s46 = sphi 0, %s45
      %s60 = sphi 0, %s46
      %s68 = sphi 0, %s70
      %s71 = sphi 0, %s68
      %s72 = sphi 0, %s71
      %s88 = sphi 0, %s72
      %s96 = sphi 0, %s98
      %s99 = sphi 0, %s96
      %s100 = sphi 0, %s99
      %s116 = sphi 0, %s100
      %s126 = sphi 0, %s128
      %s129 = sphi 0, %s126
      %s130 = sphi 0, %s129
      %s146 = sphi 0, %s130
    $region4: #{tpu_custom_call.1} parent=1 // loop_header_branch
      %19 = sbr.rel (%p17) target = $region8
    $region5: #{tpu_custom_call.1} parent=1 // loop_body
      %s21 = ssub.s32 %s16, 1
      %s22 = ssub.s32 %s16, 2
      %s32 = sadd.s32 1, %s25
      %p33 = scmp.ge.s32.totalorder %s32, 1
      %s34 = scalar_select %p33, 0, %s32
      %s35 = sadd.s32 1, %s24
      %s36 = scalar_select %p33, %s35, %s24
      %p37 = scmp.ge.s32.totalorder %s36, 1
      %s38 = scalar_select %p37, 0, %s36
      %s39 = sadd.s32 1, %s23
      %s40 = scalar_select %p37, %s39, %s23
      %p41 = scmp.ge.s32.totalorder %s40, 2
      %s42 = scalar_select %p41, 0, %s40
      %s44 = sadd.s32 %s43, 1
      %p47 = scmp.eq.s32.totalorder %s16, 1
      %p48 = scmp.ne.s32.totalorder %s43, %s45
      %p49 = scmp.eq.s32.totalorder %s16, 0
      %p50 = por %p48, %p49
      %p51 = scmp.ne.s32.totalorder %s43, %s45
      %p52 = scmp.eq.s32.totalorder %s21, 1
      %p53 = por %p51, %p52
      %p54 = scmp.ne.s32.totalorder %s45, %s46
      %p55 = scmp.eq.s32.totalorder %s21, 0
      %p56 = por %p54, %p55
      %p57 = scmp.ne.s32.totalorder %s45, %s46
      %p58 = scmp.eq.s32.totalorder %s22, 1
      %p59 = por %p57, %p58
      %p61 = scmp.ne.s32.totalorder %s46, %s60
      %p62 = scmp.eq.s32.totalorder %s22, 0
      %p63 = por %p61, %p62
      %s64 = ssub.s32 %s23, %s42
      %s65 = ssub.s32 %s24, %s38
      %s66 = sor.u32 %s64, %s65
      %p67 = scmp.eq.s32.totalorder %s66, 0
      %s69 = sadd.s32 %s68, 1
      %s70 = scalar_select %p67, %s68, %s69
      %p73 = pneg %p67
      %p74 = scmp.eq.s32.totalorder %s16, 1
      %p75 = por %p73, %p74
      %p76 = scmp.ne.s32.totalorder %s68, %s71
      %p77 = scmp.eq.s32.totalorder %s16, 0
      %p78 = por %p76, %p77
      %p79 = scmp.ne.s32.totalorder %s68, %s71
      %p80 = scmp.eq.s32.totalorder %s21, 1
      %p81 = por %p79, %p80
      %p82 = scmp.ne.s32.totalorder %s71, %s72
      %p83 = scmp.eq.s32.totalorder %s21, 0
      %p84 = por %p82, %p83
      %p85 = scmp.ne.s32.totalorder %s71, %s72
      %p86 = scmp.eq.s32.totalorder %s22, 1
      %p87 = por %p85, %p86
      %p89 = scmp.ne.s32.totalorder %s72, %s88
      %p90 = scmp.eq.s32.totalorder %s22, 0
      %p91 = por %p89, %p90
      %s92 = ssub.s32 %s23, %s42
      %s93 = ssub.s32 %s25, %s34
      %s94 = sor.u32 %s92, %s93
      %p95 = scmp.eq.s32.totalorder %s94, 0
      %s97 = sadd.s32 %s96, 1
      %s98 = scalar_select %p95, %s96, %s97
      %p101 = pneg %p95
      %p102 = scmp.eq.s32.totalorder %s16, 1
      %p103 = por %p101, %p102
      %p104 = scmp.ne.s32.totalorder %s96, %s99
      %p105 = scmp.eq.s32.totalorder %s16, 0
      %p106 = por %p104, %p105
      %p107 = scmp.ne.s32.totalorder %s96, %s99
      %p108 = scmp.eq.s32.totalorder %s21, 1
      %p109 = por %p107, %p108
      %p110 = scmp.ne.s32.totalorder %s99, %s100
      %p111 = scmp.eq.s32.totalorder %s21, 0
      %p112 = por %p110, %p111
      %p113 = scmp.ne.s32.totalorder %s99, %s100
      %p114 = scmp.eq.s32.totalorder %s22, 1
      %p115 = por %p113, %p114
      %p117 = scmp.ne.s32.totalorder %s100, %s116
      %p118 = scmp.eq.s32.totalorder %s22, 0
      %p119 = por %p117, %p118
      %s120 = ssub.s32 %s23, %s42
      %s121 = ssub.s32 %s24, %s38
      %s122 = sor.u32 %s120, %s121
      %s123 = ssub.s32 %s25, %s34
      %s124 = sor.u32 %s122, %s123
      %p125 = scmp.eq.s32.totalorder %s124, 0
      %s127 = sadd.s32 %s126, 1
      %s128 = scalar_select %p125, %s126, %s127
      %p131 = pneg %p125
      %p132 = scmp.eq.s32.totalorder %s16, 1
      %p133 = por %p131, %p132
      %p134 = scmp.ne.s32.totalorder %s126, %s129
      %p135 = scmp.eq.s32.totalorder %s16, 0
      %p136 = por %p134, %p135
      %p137 = scmp.ne.s32.totalorder %s126, %s129
      %p138 = scmp.eq.s32.totalorder %s21, 1
      %p139 = por %p137, %p138
      %p140 = scmp.ne.s32.totalorder %s129, %s130
      %p141 = scmp.eq.s32.totalorder %s21, 0
      %p142 = por %p140, %p141
      %p143 = scmp.ne.s32.totalorder %s129, %s130
      %p144 = scmp.eq.s32.totalorder %s22, 1
      %p145 = por %p143, %p144
      %p147 = scmp.ne.s32.totalorder %s130, %s146
      %p148 = scmp.eq.s32.totalorder %s22, 0
      %p149 = por %p147, %p148
      %p150 = scmp.le.s32.totalorder 1, %s16
      %p151 = scmp.lt.s32.totalorder %s16, 3
      %p152 = pnand %p150, %p151
      %p153 = pneg %p152
      // Predicated region
      $region9: #{tpu_custom_call.1} parent=5 // pred_check
        _
      $region10: #{tpu_custom_call.1} parent=5 // pred_check_branch
        %155 = sbr.rel (%p152) target = $region12
      $region11: #{tpu_custom_call.1} parent=5 // pred_region
        %s156 = ssub.s32 %s16, 1
        // Predicated region
        $region13: #{tpu_custom_call.1} parent=11 // pred_check
          %p157 = pneg %p56
        $region14: #{tpu_custom_call.1} parent=11 // pred_check_branch
          %159 = sbr.rel (%p157) target = $region16
        $region15: #{tpu_custom_call.1} parent=11 // pred_region
          %s161 = ssub.s32 512, 512
          %162 = vsyncadd [#allocation4], %s161
          %s163 = sshll.u32 [#allocation3], 4
          %s164 = int_to_ptr.vmem [resolvable:$true] %s163
          %169 = dma.hbm_to_vmem [thread:$0]  %s0, 512, %s164, [#allocation4], 128, 128, 8
        $region16: #{tpu_custom_call.1} parent=11 // pred_fallthru
          _
      $region12: #{tpu_custom_call.1} parent=5 // pred_fallthru
        _
      %p170 = scmp.lt.s32.totalorder %s16, 2
      // Predicated region
      $region17: #{tpu_custom_call.1} parent=5 // pred_check
        %p171 = pneg %p170
      $region18: #{tpu_custom_call.1} parent=5 // pred_check_branch
        %173 = sbr.rel (%p171) target = $region20
      $region19: #{tpu_custom_call.1} parent=5 // pred_region
        // Predicated region
        $region21: #{tpu_custom_call.1} parent=19 // pred_check
          %p174 = pneg %p78
        $region22: #{tpu_custom_call.1} parent=19 // pred_check_branch
          %176 = sbr.rel (%p174) target = $region24
        $region23: #{tpu_custom_call.1} parent=19 // pred_region
          %s177 = sand.u32 %s16, 1
          %s178 = scalar_lea.sflag [#allocation7], %s177
          %s179 = sand.u32 %s68, 1
          %s180 = smul.addr %s179, 8
          %s181 = scalar_lea.vmem [#allocation6], %s180
          %s183 = ssub.s32 128, 128
          %184 = vsyncadd %s178, %s183
          %s185 = sadd.s32 %s24, %s23
          %s186 = smul.addr %s185, 128
          %s187 = scalar_lea.hbm %s1, %s186
          %s189 = sshll.u32 %s181, 4
          %s190 = int_to_ptr.vmem [resolvable:$true] %s189
          %192 = dma.hbm_to_vmem [thread:$0]  %s187, 128, %s190, %s178
        $region24: #{tpu_custom_call.1} parent=19 // pred_fallthru
          _
        // Predicated region
        $region25: #{tpu_custom_call.1} parent=19 // pred_check
          %p193 = pneg %p106
        $region26: #{tpu_custom_call.1} parent=19 // pred_check_branch
          %195 = sbr.rel (%p193) target = $region28
        $region27: #{tpu_custom_call.1} parent=19 // pred_region
          %s196 = sand.u32 %s16, 1
          %s197 = scalar_lea.sflag [#allocation7], %s196
          %s198 = sand.u32 %s96, 1
          %s199 = smul.addr %s198, 32
          %s200 = scalar_lea.vmem [#allocation8], %s199
          %s202 = ssub.s32 512, 512
          %203 = vsyncadd %s197, %s202
          %s204 = smul.addr %s23, 4
          %s205 = sadd.s32 %s25, %s204
          %s206 = smul.addr %s205, 128
          %s207 = scalar_lea.hbm %s2, %s206
          %s208 = sshll.u32 %s200, 4
          %s209 = int_to_ptr.vmem [resolvable:$true] %s208
          %214 = dma.hbm_to_vmem [thread:$0]  %s207, 512, %s209, %s197, 128, 128, 8
        $region28: #{tpu_custom_call.1} parent=19 // pred_fallthru
          _
      $region20: #{tpu_custom_call.1} parent=5 // pred_fallthru
        _
      %p215 = scmp.le.s32.totalorder 1, %s16
      %p216 = scmp.lt.s32.totalorder %s16, 3
      %p217 = pnand %p215, %p216
      %p218 = pneg %p217
      // Predicated region
      $region29: #{tpu_custom_call.1} parent=5 // pred_check
        _
      $region30: #{tpu_custom_call.1} parent=5 // pred_check_branch
        %220 = sbr.rel (%p217) target = $region32
      $region31: #{tpu_custom_call.1} parent=5 // pred_region
        %s221 = ssub.s32 %s16, 1
        // Predicated region
        $region33: #{tpu_custom_call.1} parent=31 // pred_check
          %p222 = pneg %p56
        $region34: #{tpu_custom_call.1} parent=31 // pred_check_branch
          %224 = sbr.rel (%p222) target = $region36
        $region35: #{tpu_custom_call.1} parent=31 // pred_region
          %225 = dma.done [#allocation4], 512
        $region36: #{tpu_custom_call.1} parent=31 // pred_fallthru
          _
        %s226 = sand.u32 %s21, 1
        %s227 = scalar_lea.sflag [#allocation7], %s226
        %s228 = sand.u32 %s71, 1
        %s229 = smul.addr %s228, 8
        %s230 = scalar_lea.vmem [#allocation6], %s229
        // Predicated region
        $region37: #{tpu_custom_call.1} parent=31 // pred_check
          %p231 = pneg %p84
        $region38: #{tpu_custom_call.1} parent=31 // pred_check_branch
          %233 = sbr.rel (%p231) target = $region40
        $region39: #{tpu_custom_call.1} parent=31 // pred_region
          %234 = dma.done %s227, 128
        $region40: #{tpu_custom_call.1} parent=31 // pred_fallthru
          _
        %s235 = sand.u32 %s21, 1
        %s236 = scalar_lea.sflag [#allocation7], %s235
        %s237 = sand.u32 %s99, 1
        %s238 = smul.addr %s237, 32
        %s239 = scalar_lea.vmem [#allocation8], %s238
        // Predicated region
        $region41: #{tpu_custom_call.1} parent=31 // pred_check
          %p240 = pneg %p112
        $region42: #{tpu_custom_call.1} parent=31 // pred_check_branch
          %242 = sbr.rel (%p240) target = $region44
        $region43: #{tpu_custom_call.1} parent=31 // pred_region
          %243 = dma.done %s236, 512
        $region44: #{tpu_custom_call.1} parent=31 // pred_fallthru
          _
        %p244 = pneg %p56
        %p245 = pneg %p53
        %s246 = sand.u32 %s21, 1
        %s247 = scalar_lea.sflag [#allocation7], %s246
        %s248 = sand.u32 %s71, 1
        %s249 = smul.addr %s248, 8
        %s250 = scalar_lea.vmem [#allocation6], %s249
        %p251 = pneg %p84
        %p252 = pneg %p81
        %s253 = sand.u32 %s21, 1
        %s254 = scalar_lea.sflag [#allocation7], %s253
        %s255 = sand.u32 %s99, 1
        %s256 = smul.addr %s255, 32
        %s257 = scalar_lea.vmem [#allocation8], %s256
        %p258 = pneg %p112
        %p259 = pneg %p109
        %p260 = pneg %p142
        %p261 = pneg %p139
        %s262 = sand.u32 %s129, 1
        %s263 = scalar_lea.sflag [#allocation5], %s262
        %s264 = sand.u32 %s129, 1
        %s265 = smul.addr %s264, 8
        %s266 = scalar_lea.vmem [#allocation9], %s265
        %p267 = scmp.eq.s32.totalorder %s28, 0
        // Predicated region
        $region45: #{tpu_custom_call.1} parent=31 // pred_check
          %p268 = pneg %p267
        $region46: #{tpu_custom_call.1} parent=31 // pred_check_branch
          %270 = sbr.rel (%p268) target = $region48
        $region47: #{tpu_custom_call.1} parent=31 // pred_region
          %v271 = vld [vmem:[%s230] sm:$0xff]
          %v272 = vld [vmem:[#allocation3] sm:$0xff]
          %v273 = vld [vmem:[#allocation3 + $0x8] sm:$0xff]
          %v274 = vld [vmem:[#allocation3 + $0x10] sm:$0xff]
          %v275 = vld [vmem:[#allocation3 + $0x18] sm:$0xff]
          %vm276 = vcmask 261120
          %v278 = vsel %vm276, %v271, 0
          %280 = vmatprep.subr.mxu0 0.0
          %281 = vmatpush1.msra.mxu0 %v272
          %282 = vmatprep.subr.mxu0 0.0
          %283 = vmatpush1.msra.mxu0 %v273
          %284 = vmatprep.subr.mxu0 0.0
          %285 = vmatpush1.msra.mxu0 %v274
          %286 = vmatprep.subr.mxu0 0.0
          %287 = vmatpush1.msra.mxu0 %v275
          %288 = vmatprep.subr.mxu0 0.0
          %289 = vmatpush1.msra.mxu0 0.0
          %290 = vmatprep.subr.mxu0 0.0
          %291 = vmatpush1.msra.mxu0 0.0
          %292 = vmatprep.subr.mxu0 0.0
          %293 = vmatpush1.msra.mxu0 0.0
          %294 = vmatprep.subr.mxu0 0.0
          %295 = vmatpush1.msra.mxu0 0.0
          %296 = vmatprep.subr.mxu0 0.0
          %297 = vmatpush1.msra.mxu0 0.0
          %298 = vmatprep.subr.mxu0 0.0
          %299 = vmatpush1.msra.mxu0 0.0
          %300 = vmatprep.subr.mxu0 0.0
          %301 = vmatpush1.msra.mxu0 0.0
          %302 = vmatprep.subr.mxu0 0.0
          %303 = vmatpush1.msra.mxu0 0.0
          %304 = vmatprep.subr.mxu0 0.0
          %305 = vmatpush1.msra.mxu0 0.0
          %306 = vmatprep.subr.mxu0 0.0
          %307 = vmatpush1.msra.mxu0 0.0
          %308 = vmatprep.subr.mxu0 0.0
          %309 = vmatpush1.msra.mxu0 0.0
          %310 = vmatprep.subr.mxu0 0.0
          %311 = vmatpush1.msra.mxu0 0.0
          %312 = vmatprep.subr.mxu0 0.0
          %313 = vmatpush1.msra.mxu0 0.0
          %314 = vmatprep.subr.mxu0 0.0
          %315 = vmatpush1.msra.mxu0 0.0
          %316 = vmatprep.subr.mxu0 0.0
          %317 = vmatpush1.msra.mxu0 0.0
          %318 = vmatprep.subr.mxu0 0.0
          %319 = vmatpush1.msra.mxu0 0.0
          %320 = vmatprep.subr.mxu0 0.0
          %321 = vmatpush1.msra.mxu0 0.0
          %322 = vmatprep.subr.mxu0 0.0
          %323 = vmatpush1.msra.mxu0 0.0
          %324 = vmatprep.subr.mxu0 0.0
          %325 = vmatpush1.msra.mxu0 0.0
          %326 = vmatprep.subr.mxu0 0.0
          %327 = vmatpush1.msra.mxu0 0.0
          %328 = vmatprep.subr.mxu0 0.0
          %329 = vmatpush1.msra.mxu0 0.0
          %330 = vmatprep.subr.mxu0 0.0
          %331 = vmatpush1.msra.mxu0 0.0
          %332 = vmatprep.subr.mxu0 0.0
          %333 = vmatpush1.msra.mxu0 0.0
          %334 = vmatprep.subr.mxu0 0.0
          %335 = vmatpush1.msra.mxu0 0.0
          %336 = vmatprep.subr.mxu0 0.0
          %337 = vmatpush1.msra.mxu0 0.0
          %338 = vmatprep.subr.mxu0 0.0
          %339 = vmatpush1.msra.mxu0 0.0
          %340 = vmatprep.subr.mxu0 0.0
          %341 = vmatpush1.msra.mxu0 0.0
          %342 = vmatprep.subr.mxu0 0.0
          %343 = vmatpush1.msra.mxu0 0.0
          %344 = vmatprep.mubr.f32.mxu0 0.0
          %345 = vmatmul.mubr.f32.gmra.mrb[0].mxu0 %v278
          %v346 = vpop.f32.mrb[0].mxu0
          %v347 = vadd.f32 0.0, %v346
          %v348 = vpop.f32.mrb[0].mxu0
          %349 = vdwg.mxu0
          %350 = vst.msk [vmem:[#allocation2] sm:$0xff] %vm276, %v347
        $region48: #{tpu_custom_call.1} parent=31 // pred_fallthru
          _
        %v351 = vld [vmem:[#allocation2] sm:$0xff]
        %v352 = vld [vmem:[%s239] sm:$0xff]
        %v353 = vld [vmem:[%s239 + $0x8] sm:$0xff]
        %v354 = vld [vmem:[%s239 + $0x10] sm:$0xff]
        %v355 = vld [vmem:[%s239 + $0x18] sm:$0xff]
        %vm356 = vcmask 261120
        %v358 = vsel %vm356, %v351, 0
        %360 = vmatprep.subr.mxu0 0.0
        %361 = vmatpush1.msra.mxu0 %v352
        %362 = vmatprep.subr.mxu0 0.0
        %363 = vmatpush1.msra.mxu0 %v353
        %364 = vmatprep.subr.mxu0 0.0
        %365 = vmatpush1.msra.mxu0 %v354
        %366 = vmatprep.subr.mxu0 0.0
        %367 = vmatpush1.msra.mxu0 %v355
        %368 = vmatprep.subr.mxu0 0.0
        %369 = vmatpush1.msra.mxu0 0.0
        %370 = vmatprep.subr.mxu0 0.0
        %371 = vmatpush1.msra.mxu0 0.0
        %372 = vmatprep.subr.mxu0 0.0
        %373 = vmatpush1.msra.mxu0 0.0
        %374 = vmatprep.subr.mxu0 0.0
        %375 = vmatpush1.msra.mxu0 0.0
        %376 = vmatprep.subr.mxu0 0.0
        %377 = vmatpush1.msra.mxu0 0.0
        %378 = vmatprep.subr.mxu0 0.0
        %379 = vmatpush1.msra.mxu0 0.0
        %380 = vmatprep.subr.mxu0 0.0
        %381 = vmatpush1.msra.mxu0 0.0
        %382 = vmatprep.subr.mxu0 0.0
        %383 = vmatpush1.msra.mxu0 0.0
        %384 = vmatprep.subr.mxu0 0.0
        %385 = vmatpush1.msra.mxu0 0.0
        %386 = vmatprep.subr.mxu0 0.0
        %387 = vmatpush1.msra.mxu0 0.0
        %388 = vmatprep.subr.mxu0 0.0
        %389 = vmatpush1.msra.mxu0 0.0
        %390 = vmatprep.subr.mxu0 0.0
        %391 = vmatpush1.msra.mxu0 0.0
        %392 = vmatprep.subr.mxu0 0.0
        %393 = vmatpush1.msra.mxu0 0.0
        %394 = vmatprep.subr.mxu0 0.0
        %395 = vmatpush1.msra.mxu0 0.0
        %396 = vmatprep.subr.mxu0 0.0
        %397 = vmatpush1.msra.mxu0 0.0
        %398 = vmatprep.subr.mxu0 0.0
        %399 = vmatpush1.msra.mxu0 0.0
        %400 = vmatprep.subr.mxu0 0.0
        %401 = vmatpush1.msra.mxu0 0.0
        %402 = vmatprep.subr.mxu0 0.0
        %403 = vmatpush1.msra.mxu0 0.0
        %404 = vmatprep.subr.mxu0 0.0
        %405 = vmatpush1.msra.mxu0 0.0
        %406 = vmatprep.subr.mxu0 0.0
        %407 = vmatpush1.msra.mxu0 0.0
        %408 = vmatprep.subr.mxu0 0.0
        %409 = vmatpush1.msra.mxu0 0.0
        %410 = vmatprep.subr.mxu0 0.0
        %411 = vmatpush1.msra.mxu0 0.0
        %412 = vmatprep.subr.mxu0 0.0
        %413 = vmatpush1.msra.mxu0 0.0
        %414 = vmatprep.subr.mxu0 0.0
        %415 = vmatpush1.msra.mxu0 0.0
        %416 = vmatprep.subr.mxu0 0.0
        %417 = vmatpush1.msra.mxu0 0.0
        %418 = vmatprep.subr.mxu0 0.0
        %419 = vmatpush1.msra.mxu0 0.0
        %420 = vmatprep.subr.mxu0 0.0
        %421 = vmatpush1.msra.mxu0 0.0
        %422 = vmatprep.subr.mxu0 0.0
        %423 = vmatpush1.msra.mxu0 0.0
        %424 = vmatprep.mubr.f32.mxu0 0.0
        %425 = vmatmul.mubr.f32.gmra.mrb[0].mxu0 %v358
        %v426 = vpop.f32.mrb[0].mxu0
        %v427 = vadd.f32 0.0, %v426
        %v428 = vpop.f32.mrb[0].mxu0
        %429 = vdwg.mxu0
        %430 = vst [vmem:[%s266] sm:$0xff] %v427
        %s431 = sand.u32 %s129, 1
        %s432 = scalar_lea.sflag [#allocation5], %s431
        %s433 = sand.u32 %s129, 1
        %s434 = smul.addr %s433, 8
        %s435 = scalar_lea.vmem [#allocation9], %s434
        // Predicated region
        $region49: #{tpu_custom_call.1} parent=31 // pred_check
          %p436 = pneg %p139
        $region50: #{tpu_custom_call.1} parent=31 // pred_check_branch
          %438 = sbr.rel (%p436) target = $region52
        $region51: #{tpu_custom_call.1} parent=31 // pred_region
          %s440 = ssub.s32 128, 128
          %441 = vsyncadd %s432, %s440
          %s442 = sadd.s32 %s28, %s27
          %s443 = sadd.s32 %s442, %s26
          %s444 = smul.addr %s443, 128
          %s445 = scalar_lea.hbm %s3, %s444
          %s447 = sshll.u32 %s435, 4
          %s448 = int_to_ptr.vmem [resolvable:$true] %s447
          %450 = dma.vmem_to_hbm [thread:$0]  %s448, 128, %s445, %s432
        $region52: #{tpu_custom_call.1} parent=31 // pred_fallthru
          _
      $region32: #{tpu_custom_call.1} parent=5 // pred_fallthru
        _
      %p451 = scmp.le.s32.totalorder 2, %s16
      // Predicated region
      $region53: #{tpu_custom_call.1} parent=5 // pred_check
        %p452 = pneg %p451
      $region54: #{tpu_custom_call.1} parent=5 // pred_check_branch
        %454 = sbr.rel (%p452) target = $region56
      $region55: #{tpu_custom_call.1} parent=5 // pred_region
        %s455 = ssub.s32 %s16, 2
        // Predicated region
        $region57: #{tpu_custom_call.1} parent=55 // pred_check
          %p456 = pneg %p145
        $region58: #{tpu_custom_call.1} parent=55 // pred_check_branch
          %458 = sbr.rel (%p456) target = $region60
        $region59: #{tpu_custom_call.1} parent=55 // pred_region
          %s459 = sand.u32 %s130, 1
          %s460 = scalar_lea.sflag [#allocation5], %s459
          %s461 = sand.u32 %s130, 1
          %s462 = smul.addr %s461, 8
          %s463 = scalar_lea.vmem [#allocation9], %s462
          %464 = dma.done %s460, 128
        $region60: #{tpu_custom_call.1} parent=55 // pred_fallthru
          _
      $region56: #{tpu_custom_call.1} parent=5 // pred_fallthru
        _
    $region6: #{tpu_custom_call.1} parent=1 // loop_footer
      %s20 = sadd.s32 1, %s16
    $region7: #{tpu_custom_call.1} parent=1 // loop_footer_branch
      %15 = sbr.rel target = $region3
    $region8: #{tpu_custom_call.1} parent=1 // loop_exit
      _
    %465 = vsyncpa [#allocation4], 1
    %s466 = scalar_lea.sflag [#allocation4], 1
    %467 = vsyncpa %s466, 1
    %468 = vsyncpa [#allocation7], 1
    %s469 = scalar_lea.sflag [#allocation7], 1
    %470 = vsyncpa %s469, 1
    %471 = vsyncpa [#allocation5], 1
    %s472 = scalar_lea.sflag [#allocation5], 1
    %473 = vsyncpa %s472, 1

</llo_original>
